<compile_context>
chip_gen: v7x
topology: tpu7x:2x2x1
jax: 0.10.0
libtpu: 0.0.40
codegen_flags: <defaults>
</compile_context>

<pallas_src>
import functools

import jax
import jax.numpy as jnp
from jax import lax
from jax.experimental import pallas as pl
from jax.experimental.pallas import tpu as pltpu


# ----------------------------------------------------------------------------- kernels


def _epilogue_store(scores, dcol_ref, drow_ref, out_ref, i, j, margin):
    """margin / relu / diag-mask / tile-sum epilogue; writes the per-(i,j) partial sum."""
    d1 = dcol_ref[...].astype(jnp.float32)            # (bm, 1): diag for rows of this tile
    d2 = drow_ref[...].astype(jnp.float32)            # (1, bn): diag for cols of this tile

    cost = (jnp.maximum(margin + scores - d1, 0.0)
            + jnp.maximum(margin + scores - d2, 0.0))
    tm, tn = scores.shape

    # Off-diagonal tiles never intersect the global diagonal (bm == bn): plain sum.
    @pl.when(i != j)
    def _off_diag():
        out_ref[...] = jnp.sum(cost).reshape(1, 1)

    # Diagonal tiles: zero the local identity diagonal before summing.
    @pl.when(i == j)
    def _on_diag():
        eye = (lax.broadcasted_iota(jnp.int32, (tm, tn), 0)
               == lax.broadcasted_iota(jnp.int32, (tm, tn), 1))
        out_ref[...] = jnp.sum(jnp.where(eye, 0.0, cost)).reshape(1, 1)


def _contrastive_kernel_fused(dcol_ref, drow_ref, im_ref, s_ref, out_ref, *, margin):
    """nk == 1 path: full-depth contraction, no accumulator scratch, no K grid axis."""
    i = pl.program_id(0)
    j = pl.program_id(1)
    scores = lax.dot_general(
        im_ref[...], s_ref[...],
        dimension_numbers=(((1,), (1,)), ((), ())),
        preferred_element_type=jnp.float32,
    )
    _epilogue_store(scores, dcol_ref, drow_ref, out_ref, i, j, margin)


def _contrastive_kernel_tiled(dcol_ref, drow_ref, im_ref, s_ref, out_ref, acc_ref, *, margin):
    """nk > 1 path: K-tiled MXU accumulation into an f32 VMEM scratch."""
    i = pl.program_id(0)
    j = pl.program_id(1)
    k = pl.program_id(2)
    nk = pl.num_programs(2)

    @pl.when(k == 0)
    def _init_acc():
        acc_ref[...] = jnp.zeros_like(acc_ref)

    acc_ref[...] += lax.dot_general(
        im_ref[...], s_ref[...],
        dimension_numbers=(((1,), (1,)), ((), ())),
        preferred_element_type=jnp.float32,
    )

    @pl.when(k == nk - 1)
    def _epilogue():
        _epilogue_store(acc_ref[...], dcol_ref, drow_ref, out_ref, i, j, margin)


# ----------------------------------------------------------------------------- wrapper


def _vmem_capacity_bytes():
    try:
        info = pltpu.get_tpu_info()
        cap = getattr(info, "vmem_capacity_bytes", None)
        if cap:
            return int(cap)
    except Exception:
        pass
    return 64 * 1024 * 1024  # conservative fallback (v7x per-core VMEM)


def _divisors_desc(n, cap):
    cap = max(1, min(n, cap))
    return [d for d in range(cap, 0, -1) if n % d == 0]


def _auto_tiles(B, D, itemsize, budget):
    """Pick (bb, bk) with bb = bm = bn. Prefer bk == D, then the largest bb <= 512 that fits."""
    def ok_bb(bb):
        # sublane constraint for im/s tiles, lane constraint for the (1, bn) diag row
        return (bb % 8 == 0 or bb == B) and (bb % 128 == 0 or bb == B)

    def ok_bk(bk):
        return bk % 128 == 0 or bk == D

    def fits(bb, bk):
        nk = D // bk
        inputs = 2 * 2 * bb * bk * itemsize          # im + s tiles, double-buffered
        acc = bb * bb * 4 if nk > 1 else 0           # f32 accumulator scratch
        epi = 4 * bb * bb * 4                        # epilogue temporaries (cost/mask/etc.)
        return inputs + acc + epi <= budget

    bbs = [d for d in _divisors_desc(B, 512) if ok_bb(d)] or [B]
    bks = [d for d in _divisors_desc(D, D) if ok_bk(d)] or [D]

    # 1) Full-depth contraction if at all possible (drops the K axis + acc scratch and
    #    keeps the im tile resident across the whole j sweep).
    for bb in bbs:
        if fits(bb, D):
            return bb, D
    # 2) Otherwise largest bk first (amortize acc RMW; v5e store-slot pressure), then bb.
    for bk in bks:
        for bb in bbs:
            if fits(bb, bk):
                return bb, bk
    return bbs[-1], bks[-1]


def contrastive_loss(im, s, margin=1.0, *, block_m=None, block_n=None, block_k=None,
                     mxu_dtype=jnp.bfloat16):
    B, D = im.shape
    assert s.shape == (B, D)

    # Diagonal of the score matrix computed once as rowsum(im * s) in f32 (O(B*D) VPU work),
    # streamed in as small (B,1) / (1,B) arrays.
    diag = jnp.sum(im.astype(jnp.float32) * s.astype(jnp.float32), axis=1)
    d_col = diag.reshape(B, 1)
    d_row = diag.reshape(1, B)

    # MXU feed dtype: bf16 by default (native on all generations, halves HBM traffic).
    if (mxu_dtype is not None and jnp.issubdtype(im.dtype, jnp.floating)
            and im.dtype != jnp.dtype(mxu_dtype)):
        im_mx = im.astype(mxu_dtype)
        s_mx = s.astype(mxu_dtype)
    else:
        im_mx, s_mx = im, s
    itemsize = jnp.dtype(im_mx.dtype).itemsize

    # Generation-aware VMEM budget (v5e/v6e: 128 MiB, v7x: 64 MiB per core).
    vmem_cap = _vmem_capacity_bytes()
    budget = max(8 << 20, min(int(vmem_cap * 0.45), 56 << 20))
    vmem_limit = max(32 << 20, min(int(vmem_cap * 0.75), 96 << 20))

    if block_m is None and block_n is None and block_k is None:
        bm, bk = _auto_tiles(B, D, itemsize, budget)
        bn = bm
    else:
        bm = block_m if block_m is not None else min(B, 256)
        bn = block_n if block_n is not None else min(B, 256)
        bk = block_k if block_k is not None else min(D, 512)
    assert bm == bn, "bm must equal bn (diagonal mask assumes square batch tiles)"
    assert B % bm == 0 and B % bn == 0 and D % bk == 0, "shapes must divide tile sizes"

    ni, nj, nk = B // bm, B // bn, D // bk

    cost = pl.CostEstimate(
        flops=2 * B * B * D,
        transcendentals=0,
        bytes_accessed=int(B * D * itemsize * (nj if nk > 1 else 1)   # im stream
                           + B * D * itemsize * ni                    # s stream
                           + 2 * B * 4 + ni * nj * 4),
    )

    # Per-(i, j) partial sums; the first two (grid) dims are squeezed in-kernel.
    out_shape = jax.ShapeDtypeStruct((ni, nj, 1, 1), jnp.float32)

    if nk == 1:
        kernel = functools.partial(_contrastive_kernel_fused, margin=float(margin))
        grid = (ni, nj)
        in_specs = [
            pl.BlockSpec((bm, 1), lambda i, j: (i, 0)),     # diag for row block i
            pl.BlockSpec((1, bn), lambda i, j: (0, j)),     # diag for col block j
            pl.BlockSpec((bm, D), lambda i, j: (i, 0)),     # im tile (resident across j)
            pl.BlockSpec((bn, D), lambda i, j: (j, 0)),     # s tile
        ]
        out_spec = pl.BlockSpec((None, None, 1, 1), lambda i, j: (i, j, 0, 0))
        scratch = []
        dims = ("parallel", "parallel")
    else:
        kernel = functools.partial(_contrastive_kernel_tiled, margin=float(margin))
        grid = (ni, nj, nk)
        in_specs = [
            pl.BlockSpec((bm, 1), lambda i, j, k: (i, 0)),
            pl.BlockSpec((1, bn), lambda i, j, k: (0, j)),
            pl.BlockSpec((bm, bk), lambda i, j, k: (i, k)),
            pl.BlockSpec((bn, bk), lambda i, j, k: (j, k)),
        ]
        out_spec = pl.BlockSpec((None, None, 1, 1), lambda i, j, k: (i, j, 0, 0))
        scratch = [pltpu.VMEM((bm, bn), jnp.float32)]
        dims = ("parallel", "parallel", "arbitrary")

    partials = pl.pallas_call(
        kernel,
        out_shape=out_shape,
        grid_spec=pltpu.PrefetchScalarGridSpec(
            num_scalar_prefetch=0,
            grid=grid,
            in_specs=in_specs,
            out_specs=out_spec,
            scratch_shapes=scratch,
        ),
        compiler_params=pltpu.CompilerParams(
            dimension_semantics=dims,
            vmem_limit_bytes=int(vmem_limit),
        ),
        cost_estimate=cost,
    )(d_col, d_row, im_mx, s_mx)

    return jnp.sum(partials)


# ----------------------------------------------------------------------------- reference


def _reference(im, s, margin=1.0):
    # Faithful JAX port of the PyTorch forward (measure='dot', max_violation=False).
    scores = jnp.dot(im, s.T, precision=lax.Precision.HIGHEST)
    diag = jnp.diagonal(scores).reshape(-1, 1)
    d1 = diag
    d2 = diag.T
    cost_s = jnp.maximum(margin + scores - d1, 0.0)
    cost_im = jnp.maximum(margin + scores - d2, 0.0)
    mask1 = scores == d1
    mask2 = mask1.T
    cost_s = jnp.where(mask1, 0.0, cost_s)
    cost_im = jnp.where(mask2, 0.0, cost_im)
    return jnp.sum(cost_s) + jnp.sum(cost_im)


if __name__ == "__main__":
    key = jax.random.PRNGKey(0)

    def _make(bkey, B, D):
        k1, k2 = jax.random.split(bkey)
        a = jax.random.normal(k1, (B, D), dtype=jnp.float32)
        b = jax.random.normal(k2, (B, D), dtype=jnp.float32)
        # L2-normalize rows so scores are O(1) against margin=1.0 (cosine-sim style use).
        a = a / jnp.linalg.norm(a, axis=1, keepdims=True)
        b = b / jnp.linalg.norm(b, axis=1, keepdims=True)
        return a, b

    k_small, k_big = jax.random.split(key)

    # 1) Small single-tile case, exact f32 MXU feed.
    im0, s0 = _make(k_small, 8, 32)
    loss0 = jax.block_until_ready(contrastive_loss(im0, s0, margin=1.0, mxu_dtype=None))
    ref0 = _reference(im0, s0, margin=1.0)
    assert jnp.allclose(loss0, ref0, rtol=2e-3, atol=1e-2), (float(loss0), float(ref0))

    # 2) Auto-tiled case (nk == 1 fused path, default bf16 MXU feed).
    im1, s1 = _make(k_big, 256, 256)
    loss1 = jax.block_until_ready(contrastive_loss(im1, s1, margin=1.0))
    ref1 = _reference(im1, s1, margin=1.0)
    assert jnp.allclose(loss1, ref1, rtol=5e-3, atol=2.0), (float(loss1), float(ref1))

    # 3) Explicit tiles exercising the full (i, j, k) accumulation grid (grid = (2, 2, 2)).
    loss2 = jax.block_until_ready(
        contrastive_loss(im1, s1, margin=1.0, block_m=128, block_n=128, block_k=128,
                         mxu_dtype=None))
    assert jnp.allclose(loss2, ref1, rtol=2e-3, atol=1.0), (float(loss2), float(ref1))

    print("KERNEL_OK")
</pallas_src>

<mosaic_0001>
module attributes {stable_mosaic.version = 11 : i64} {
  func.func @_contrastive_kernel_fused(%arg0: i32, %arg1: i32, %arg2: memref<8x1xf32, #tpu.memory_space<vmem>>, %arg3: memref<1x8xf32, #tpu.memory_space<vmem>>, %arg4: memref<8x32xf32, #tpu.memory_space<vmem>>, %arg5: memref<8x32xf32, #tpu.memory_space<vmem>>, %arg6: memref<1x1x1x1xf32, #tpu.memory_space<vmem>>) attributes {dimension_semantics = [#tpu.dimension_semantics<parallel>, #tpu.dimension_semantics<parallel>], iteration_bounds = array<i64: 1, 1>, scalar_prefetch = 0 : i64, scratch_operands = 0 : i64, tpu.core_type = #tpu.core_type<tc>, window_params = [{transform_indices = @transform_0, window_bounds = array<i64: 8, 1>}, {transform_indices = @transform_1, window_bounds = array<i64: 1, 8>}, {transform_indices = @transform_2, window_bounds = array<i64: 8, 32>}, {transform_indices = @transform_3, window_bounds = array<i64: 8, 32>}, {transform_indices = @transform_4, window_bounds = array<i64: 1, 1, 1, 1>}]} {
    %c0 = arith.constant 0 : index
    %c0_0 = arith.constant 0 : index
    %0 = vector.load %arg4[%c0, %c0_0] : memref<8x32xf32, #tpu.memory_space<vmem>>, vector<8x32xf32>
    %c0_1 = arith.constant 0 : index
    %c0_2 = arith.constant 0 : index
    %1 = vector.load %arg5[%c0_1, %c0_2] : memref<8x32xf32, #tpu.memory_space<vmem>>, vector<8x32xf32>
    %cst = arith.constant dense<0.000000e+00> : vector<8x8xf32>
    %2 = tpu.matmul %0, %1, %cst {dimension_numbers = #tpu.dot_dimension_numbers<[1], [1], [0], [0], [0, 0, 1, 0], [], []>} : vector<8x32xf32>, vector<8x32xf32>, vector<8x8xf32> -> vector<8x8xf32>
    %c0_3 = arith.constant 0 : index
    %c0_4 = arith.constant 0 : index
    %3 = vector.load %arg2[%c0_3, %c0_4] : memref<8x1xf32, #tpu.memory_space<vmem>>, vector<8x1xf32>
    %c0_5 = arith.constant 0 : index
    %c0_6 = arith.constant 0 : index
    %4 = vector.load %arg3[%c0_5, %c0_6] : memref<1x8xf32, #tpu.memory_space<vmem>>, vector<1x8xf32>
    %cst_7 = arith.constant 1.000000e+00 : f32
    %5 = vector.broadcast %cst_7 : f32 to vector<8x8xf32>
    %6 = arith.addf %5, %2 : vector<8x8xf32>
    %7 = vector.broadcast %3 : vector<8x1xf32> to vector<8x8xf32>
    %8 = arith.subf %6, %7 : vector<8x8xf32>
    %cst_8 = arith.constant 0.000000e+00 : f32
    %9 = vector.broadcast %cst_8 : f32 to vector<8x8xf32>
    %10 = arith.maximumf %8, %9 : vector<8x8xf32>
    %cst_9 = arith.constant 1.000000e+00 : f32
    %11 = vector.broadcast %cst_9 : f32 to vector<8x8xf32>
    %12 = arith.addf %11, %2 : vector<8x8xf32>
    %13 = vector.broadcast %4 : vector<1x8xf32> to vector<8x8xf32>
    %14 = arith.subf %12, %13 : vector<8x8xf32>
    %cst_10 = arith.constant 0.000000e+00 : f32
    %15 = vector.broadcast %cst_10 : f32 to vector<8x8xf32>
    %16 = arith.maximumf %14, %15 : vector<8x8xf32>
    %17 = arith.addf %10, %16 : vector<8x8xf32>
    %18 = arith.cmpi ne, %arg0, %arg1 : i32
    %19 = arith.extui %18 : i1 to i32
    %c0_i32 = arith.constant 0 : i32
    %20 = arith.cmpi ne, %19, %c0_i32 : i32
    scf.if %20 {
      %24 = vector.shape_cast %17 : vector<8x8xf32> to vector<1x8x8xf32>
      %cst_12 = arith.constant dense<0.000000e+00> : vector<1xf32>
      %25 = vector.multi_reduction <add>, %24, %cst_12 [1, 2] : vector<1x8x8xf32> to vector<1xf32>
      %26 = vector.shape_cast %25 : vector<1xf32> to vector<1x1x1xf32>
      %27 = vector.extract %26[0, 0, 0] : f32 from vector<1x1x1xf32>
      %28 = vector.broadcast %27 : f32 to vector<1x1xf32>
      %c0_13 = arith.constant 0 : index
      %c0_14 = arith.constant 0 : index
      %c0_15 = arith.constant 0 : index
      %c0_16 = arith.constant 0 : index
      %29 = vector.load %arg6[%c0_13, %c0_14, %c0_15, %c0_16] : memref<1x1x1x1xf32, #tpu.memory_space<vmem>>, vector<1x1x1x1xf32>
      %30 = vector.shape_cast %29 : vector<1x1x1x1xf32> to vector<1x1xf32>
      %31 = vector.shape_cast %28 : vector<1x1xf32> to vector<1x1x1x1xf32>
      tpu.vector_store %arg6[%c0_13, %c0_14, %c0_15, %c0_16], %31 {strides = array<i32>} : memref<1x1x1x1xf32, #tpu.memory_space<vmem>>, vector<1x1x1x1xf32>,
    } else {
    }
    %21 = arith.cmpi eq, %arg0, %arg1 : i32
    %22 = arith.extui %21 : i1 to i32
    %c0_i32_11 = arith.constant 0 : i32
    %23 = arith.cmpi ne, %22, %c0_i32_11 : i32
    scf.if %23 {
      %24 = tpu.iota {dimensions = array<i32: 0>} : vector<8x8xi32>
      %25 = tpu.iota {dimensions = array<i32: 1>} : vector<8x8xi32>
      %26 = arith.cmpi eq, %24, %25 : vector<8x8xi32>
      %cst_12 = arith.constant 0.000000e+00 : f32
      %27 = vector.broadcast %cst_12 : f32 to vector<8x8xf32>
      %28 = arith.select %26, %27, %17 : vector<8x8xi1>, vector<8x8xf32>
      %29 = vector.shape_cast %28 : vector<8x8xf32> to vector<1x8x8xf32>
      %cst_13 = arith.constant dense<0.000000e+00> : vector<1xf32>
      %30 = vector.multi_reduction <add>, %29, %cst_13 [1, 2] : vector<1x8x8xf32> to vector<1xf32>
      %31 = vector.shape_cast %30 : vector<1xf32> to vector<1x1x1xf32>
      %32 = vector.extract %31[0, 0, 0] : f32 from vector<1x1x1xf32>
      %33 = vector.broadcast %32 : f32 to vector<1x1xf32>
      %c0_14 = arith.constant 0 : index
      %c0_15 = arith.constant 0 : index
      %c0_16 = arith.constant 0 : index
      %c0_17 = arith.constant 0 : index
      %34 = vector.load %arg6[%c0_14, %c0_15, %c0_16, %c0_17] : memref<1x1x1x1xf32, #tpu.memory_space<vmem>>, vector<1x1x1x1xf32>
      %35 = vector.shape_cast %34 : vector<1x1x1x1xf32> to vector<1x1xf32>
      %36 = vector.shape_cast %33 : vector<1x1xf32> to vector<1x1x1x1xf32>
      tpu.vector_store %arg6[%c0_14, %c0_15, %c0_16, %c0_17], %36 {strides = array<i32>} : memref<1x1x1x1xf32, #tpu.memory_space<vmem>>, vector<1x1x1x1xf32>,
    } else {
    }
    return
  }
  func.func @transform_0(%arg0: i32, %arg1: i32) -> (i32, i32) {
    %c0_i32 = arith.constant 0 : i32
    %c0_i32_0 = arith.constant 0 : i32
    return %arg0, %c0_i32 : i32, i32
  }
  func.func @transform_1(%arg0: i32, %arg1: i32) -> (i32, i32) {
    %c0_i32 = arith.constant 0 : i32
    %c0_i32_0 = arith.constant 0 : i32
    return %c0_i32, %arg1 : i32, i32
  }
  func.func @transform_2(%arg0: i32, %arg1: i32) -> (i32, i32) {
    %c0_i32 = arith.constant 0 : i32
    %c0_i32_0 = arith.constant 0 : i32
    return %arg0, %c0_i32 : i32, i32
  }
  func.func @transform_3(%arg0: i32, %arg1: i32) -> (i32, i32) {
    %c0_i32 = arith.constant 0 : i32
    %c0_i32_0 = arith.constant 0 : i32
    return %arg1, %c0_i32 : i32, i32
  }
  func.func @transform_4(%arg0: i32, %arg1: i32) -> (i32, i32, i32, i32) {
    %c0_i32 = arith.constant 0 : i32
    %c0_i32_0 = arith.constant 0 : i32
    %c0_i32_1 = arith.constant 0 : i32
    return %arg0, %arg1, %c0_i32, %c0_i32_0 : i32, i32, i32, i32
  }
}

</mosaic_0001>

<llo_original>
// kernel: tpu_custom_call.1
$region0: #{tpu_custom_call.1}
  #allocation0 [shape = 'u32[]', space=smem, size = 0x4, offset = 0x4, fixed_abs, tag = 'smem constant byte address 0x4 - core index']
  #allocation1 [shape = 'u32[144,128]{1,0:T(1,128)}', space=vmem, size = 0x12000, scoped, tag = 'internal scratch']
  %s0 = inlined_call_operand.vmem [shape: f32[8,1], index: 0, kind: input, shape index: {}]
  %s1 = inlined_call_operand.hbm [shape: f32[1,8], index: 1, kind: input, shape index: {}]
  %s2 = inlined_call_operand.vmem [shape: f32[8,32], index: 2, kind: input, shape index: {}]
  %s3 = inlined_call_operand.vmem [shape: f32[8,32], index: 3, kind: input, shape index: {}]
  %s4 = inlined_call_operand.hbm [shape: f32[1,1,1,1], index: 4, kind: output, shape index: {}]
  %s5 = sld [smem:[#allocation0]]
  $region38: #{tpu_custom_call.1} parent=0
    _
  %s7 = ssub.s32 1, %s5
  %s8 = scalar_select 0, %s7, %s5
  $region1: #{tpu_custom_call.1} parent=0
    #allocation2 [shape = 'u8[512]{0}', space=vmem, size = 0x400, scoped, tag = 'input window, operand 1, single buffered']
    #allocation3 [shape = 's32[1]{0}', space=sflag, size = 0x4, scoped, tag = 'scoped memory for tpu_custom_call.1']
    #allocation4 [shape = 's32[1]{0}', space=sflag, size = 0x4, scoped, tag = 'scoped memory for tpu_custom_call.1']
    #allocation5 [shape = 'u8[512]{0}', space=vmem, size = 0x400, scoped, tag = 'output window, operand 0, single buffered']
    %9 = vsyncpa [#allocation3], 0
    %10 = vsyncpa [#allocation4], 0
    // Predicated region
    $region2: #{tpu_custom_call.1} parent=1 // pred_check
      _
    $region3: #{tpu_custom_call.1} parent=1 // pred_check_branch
      %12 = sbr.rel (0) target = $region5
    $region4: #{tpu_custom_call.1} parent=1 // pred_region
      _
    $region5: #{tpu_custom_call.1} parent=1 // pred_fallthru
      _
    // Predicated region
    $region6: #{tpu_custom_call.1} parent=1 // pred_check
      _
    $region7: #{tpu_custom_call.1} parent=1 // pred_check_branch
      %14 = sbr.rel (0) target = $region9
    $region8: #{tpu_custom_call.1} parent=1 // pred_region
      %s16 = ssub.s32 16, 16
      %17 = vsyncadd [#allocation3], %s16
      %s19 = sshll.u32 [#allocation2], 4
      %s20 = int_to_ptr.vmem [resolvable:$true] %s19
      %22 = dma.hbm_to_vmem [thread:$0]  %s1, 16, %s20, [#allocation3]
    $region9: #{tpu_custom_call.1} parent=1 // pred_fallthru
      _
    // Predicated region
    $region10: #{tpu_custom_call.1} parent=1 // pred_check
      _
    $region11: #{tpu_custom_call.1} parent=1 // pred_check_branch
      %24 = sbr.rel (0) target = $region13
    $region12: #{tpu_custom_call.1} parent=1 // pred_region
      _
    $region13: #{tpu_custom_call.1} parent=1 // pred_fallthru
      _
    // Predicated region
    $region14: #{tpu_custom_call.1} parent=1 // pred_check
      _
    $region15: #{tpu_custom_call.1} parent=1 // pred_check_branch
      %26 = sbr.rel (0) target = $region17
    $region16: #{tpu_custom_call.1} parent=1 // pred_region
      _
    $region17: #{tpu_custom_call.1} parent=1 // pred_fallthru
      _
    // Predicated region
    $region18: #{tpu_custom_call.1} parent=1 // pred_check
      _
    $region19: #{tpu_custom_call.1} parent=1 // pred_check_branch
      %28 = sbr.rel (0) target = $region21
    $region20: #{tpu_custom_call.1} parent=1 // pred_region
      %29 = dma.done [#allocation3], 16
    $region21: #{tpu_custom_call.1} parent=1 // pred_fallthru
      _
    %v30 = vld [vmem:[%s2] sm:$0xff]
    %v31 = vld [vmem:[%s3] sm:$0xff]
    %v32 = vld [vmem:[%s0] sm:$0xff]
    %v33 = vld [vmem:[#allocation2] sm:$0x1]
    %vm34 = vcmask 261120
    %v36 = vsel %vm34, %v30, 0
    %v39 = vsel %vm34, %v31, 0
    %41 = vmatprep.subr.mxu0 0.0
    %42 = vmatpush1.xpose.msra.mxu0 %v39
    %43 = vmatprep.subr.mxu0 0.0
    %44 = vmatpush1.xpose.msra.mxu0 0.0
    %45 = vmatprep.subr.mxu0 0.0
    %46 = vmatpush1.xpose.msra.mxu0 0.0
    %47 = vmatprep.subr.mxu0 0.0
    %48 = vmatpush1.xpose.msra.mxu0 0.0
    %49 = vmatprep.subr.mxu0 0.0
    %50 = vmatpush1.xpose.msra.mxu0 0.0
    %51 = vmatprep.subr.mxu0 0.0
    %52 = vmatpush1.xpose.msra.mxu0 0.0
    %53 = vmatprep.subr.mxu0 0.0
    %54 = vmatpush1.xpose.msra.mxu0 0.0
    %55 = vmatprep.subr.mxu0 0.0
    %56 = vmatpush1.xpose.msra.mxu0 0.0
    %57 = vmatprep.subr.mxu0 0.0
    %58 = vmatpush1.xpose.msra.mxu0 0.0
    %59 = vmatprep.subr.mxu0 0.0
    %60 = vmatpush1.xpose.msra.mxu0 0.0
    %61 = vmatprep.subr.mxu0 0.0
    %62 = vmatpush1.xpose.msra.mxu0 0.0
    %63 = vmatprep.subr.mxu0 0.0
    %64 = vmatpush1.xpose.msra.mxu0 0.0
    %65 = vmatprep.subr.mxu0 0.0
    %66 = vmatpush1.xpose.msra.mxu0 0.0
    %67 = vmatprep.subr.mxu0 0.0
    %68 = vmatpush1.xpose.msra.mxu0 0.0
    %69 = vmatprep.subr.mxu0 0.0
    %70 = vmatpush1.xpose.msra.mxu0 0.0
    %71 = vmatprep.subr.mxu0 0.0
    %72 = vmatpush1.xpose.msra.mxu0 0.0
    %73 = vmatprep.subr.mxu0 0.0
    %74 = vmatpush1.xpose.msra.mxu0 0.0
    %75 = vmatprep.subr.mxu0 0.0
    %76 = vmatpush1.xpose.msra.mxu0 0.0
    %77 = vmatprep.subr.mxu0 0.0
    %78 = vmatpush1.xpose.msra.mxu0 0.0
    %79 = vmatprep.subr.mxu0 0.0
    %80 = vmatpush1.xpose.msra.mxu0 0.0
    %81 = vmatprep.subr.mxu0 0.0
    %82 = vmatpush1.xpose.msra.mxu0 0.0
    %83 = vmatprep.subr.mxu0 0.0
    %84 = vmatpush1.xpose.msra.mxu0 0.0
    %85 = vmatprep.subr.mxu0 0.0
    %86 = vmatpush1.xpose.msra.mxu0 0.0
    %87 = vmatprep.subr.mxu0 0.0
    %88 = vmatpush1.xpose.msra.mxu0 0.0
    %89 = vmatprep.subr.mxu0 0.0
    %90 = vmatpush1.xpose.msra.mxu0 0.0
    %91 = vmatprep.subr.mxu0 0.0
    %92 = vmatpush1.xpose.msra.mxu0 0.0
    %93 = vmatprep.subr.mxu0 0.0
    %94 = vmatpush1.xpose.msra.mxu0 0.0
    %95 = vmatprep.subr.mxu0 0.0
    %96 = vmatpush1.xpose.msra.mxu0 0.0
    %97 = vmatprep.subr.mxu0 0.0
    %98 = vmatpush1.xpose.msra.mxu0 0.0
    %99 = vmatprep.subr.mxu0 0.0
    %100 = vmatpush1.xpose.msra.mxu0 0.0
    %101 = vmatprep.subr.mxu0 0.0
    %102 = vmatpush1.xpose.msra.mxu0 0.0
    %103 = vmatprep.subr.mxu0 0.0
    %104 = vmatpush1.xpose.msra.mxu0 0.0
    %105 = vmatprep.mubr.f32.mxu0 0.0
    %106 = vmatmul.mubr.f32.gmra.mrb[0].mxu0 %v36
    %v107 = vpop.f32.mrb[0].mxu0
    %v108 = vadd.f32 1.0, %v107
    %v109 = vpop.f32.mrb[0].mxu0
    %110 = vdwg.mxu0
    %112 = vset.pattern.permute.xlu0 0
    %113 = vperm.xlu0 %112, %v32
    %v114 = vpop.permute.xlu0 %113
    %v116 = vsub.f32 %v108, %v114
    %v117 = vmax.f32 %v116, 0.0
    %v119 = vlaneseq
    %v120 = vshrl.u32 %v119, 7
    %v121 = vsub.s32 0, %v120
    %v122 = vrot.slane %v33, %v121
    %v124 = vsub.f32 %v108, %v122
    %v125 = vmax.f32 %v124, 0.0
    %v126 = vadd.f32 %v117, %v125
    %p127 = scmp.ne.s32.totalorder 0, 0
    // Predicated region
    $region22: #{tpu_custom_call.1} parent=1 // pred_check
      %p128 = pneg %p127
    $region23: #{tpu_custom_call.1} parent=1 // pred_check_branch
      %130 = sbr.rel (%p128) target = $region25
    $region24: #{tpu_custom_call.1} parent=1 // pred_region
      %vm131 = vcmask 64512
      %v132 = vsel %vm131, %v126, 0.0
      %133 = vadd.xlane.f32.xlu0 %v132
      %v134 = vpop.xlane.xlu0 %133
      %v135 = vrot.slane %v134, 4
      %v136 = vadd.f32 %v134, %v135
      %v137 = vrot.slane %v136, 2
      %v138 = vadd.f32 %v136, %v137
      %v139 = vrot.slane %v138, 1
      %v140 = vadd.f32 %v138, %v139
      %s141 = vtos %v140
      %v142 = vstv %s141
      %vm143 = vcmask 0
      %144 = vst.msk [vmem:[#allocation5] sm:$0x1] %vm143, %v142
    $region25: #{tpu_custom_call.1} parent=1 // pred_fallthru
      _
    %p145 = scmp.eq.s32.totalorder 0, 0
    // Predicated region
    $region26: #{tpu_custom_call.1} parent=1 // pred_check
      %p146 = pneg %p145
    $region27: #{tpu_custom_call.1} parent=1 // pred_check_branch
      %148 = sbr.rel (%p146) target = $region29
    $region28: #{tpu_custom_call.1} parent=1 // pred_region
      %v149 = vlaneseq
      %v150 = vshrl.u32 %v149, 7
      %v151 = vlaneseq
      %v152 = vand.u32 %v151, 127
      %vm153 = vcmp.eq.s32.totalorder %v150, %v152
      %v154 = vsel %vm153, 0.0, %v126
      %vm155 = vcmask 64512
      %v156 = vsel %vm155, %v154, 0.0
      %157 = vadd.xlane.f32.xlu0 %v156
      %v158 = vpop.xlane.xlu0 %157
      %v159 = vrot.slane %v158, 4
      %v160 = vadd.f32 %v158, %v159
      %v161 = vrot.slane %v160, 2
      %v162 = vadd.f32 %v160, %v161
      %v163 = vrot.slane %v162, 1
      %v164 = vadd.f32 %v162, %v163
      %s165 = vtos %v164
      %v166 = vstv %s165
      %vm167 = vcmask 0
      %168 = vst.msk [vmem:[#allocation5] sm:$0x1] %vm167, %v166
    $region29: #{tpu_custom_call.1} parent=1 // pred_fallthru
      _
    // Predicated region
    $region30: #{tpu_custom_call.1} parent=1 // pred_check
      _
    $region31: #{tpu_custom_call.1} parent=1 // pred_check_branch
      %170 = sbr.rel (0) target = $region33
    $region32: #{tpu_custom_call.1} parent=1 // pred_region
      %s172 = ssub.s32 16, 16
      %173 = vsyncadd [#allocation4], %s172
      %s175 = sshll.u32 [#allocation5], 4
      %s176 = int_to_ptr.vmem [resolvable:$true] %s175
      %178 = dma.vmem_to_hbm [thread:$0]  %s176, 16, %s4, [#allocation4]
    $region33: #{tpu_custom_call.1} parent=1 // pred_fallthru
      _
    // Predicated region
    $region34: #{tpu_custom_call.1} parent=1 // pred_check
      _
    $region35: #{tpu_custom_call.1} parent=1 // pred_check_branch
      %180 = sbr.rel (0) target = $region37
    $region36: #{tpu_custom_call.1} parent=1 // pred_region
      %181 = dma.done [#allocation4], 16
    $region37: #{tpu_custom_call.1} parent=1 // pred_fallthru
      _
    %182 = vsyncpa [#allocation3], 1
    %183 = vsyncpa [#allocation4], 1

</llo_original>
